<compile_context>
chip_gen: v7x
topology: tpu7x:2x2x1
jax: 0.10.0
libtpu: 0.0.40
codegen_flags: <defaults>
</compile_context>

<pallas_src>
import math

import jax
import jax.numpy as jnp
import numpy as np
from jax.experimental import pallas as pl
from jax.experimental.pallas import tpu as pltpu


def _fused_kernel(x_ref, mt_ref, c_ref, o_ref):
    """o = M^T @ x + c   (channels on sublanes, pixels on lanes).

    x_ref  : (6, TP) f32  -- concat(x1, x2) channels of the padded canvas
    mt_ref : (9, 6)  f32  -- folded weight, transposed
    c_ref  : (9, 1)  f32  -- folded bias
    o_ref  : (9, TP) f32
    """
    x = x_ref[...]
    mt = mt_ref[...]
    # Unrolled K=6 contraction on the VPU (exact f32, lane-dense output).
    y = c_ref[...] + mt[:, 0:1] * x[0:1, :]
    for k in range(1, 6):
        y = y + mt[:, k:k + 1] * x[k:k + 1, :]
    o_ref[...] = y.astype(o_ref.dtype)


def _round_up(a, b):
    return (a + b - 1) // b * b


def model_forward(x1, x2, params, *, tile=32768, max_single_block=8192):
    """x1, x2: (N, 3, H, W) float32 (NCHW). Returns (N, 9, H+2, W+2)."""
    w1, b1, w2, b2, w3, b3, w4 = params
    f32 = jnp.float32
    N, C, H, W = x1.shape
    assert C == 3
    Hp, Wp = H + 2, W + 2
    Pn = Hp * Wp                                   # pixels per image (padded canvas)

    # ---- Fold the whole op chain into one tiny matrix + one bias vector ----
    #   v3 = x1 @ (W1^T + [I3|0]) + b1 ; out = v3 @ W3^T + b3 + v4 @ W4^T
    #   => out = x1 @ A + x2 @ B + c = concat(x1,x2) @ [A;B] + c
    w1e = w1.reshape(8, 3).T.astype(f32) + jnp.eye(3, 8, dtype=f32)   # (3, 8)
    w2e = w2.reshape(8, 3).T.astype(f32) + jnp.eye(3, 8, dtype=f32)   # (3, 8)
    w3t = w3.reshape(9, 8).T.astype(f32)                              # (8, 9)
    w4t = w4.reshape(9, 8).T.astype(f32)                              # (8, 9)
    # Exact f32 contractions of the tiny weight folds (no lossy matmul lowering).
    A = jnp.sum(w1e[:, :, None] * w3t[None, :, :], axis=1)            # (3, 9)
    B = jnp.sum(w2e[:, :, None] * w4t[None, :, :], axis=1)            # (3, 9)
    Mt = jnp.concatenate([A, B], axis=0).T                            # (9, 6)
    c = (jnp.sum(b1.astype(f32)[:, None] * w3t, axis=0)
         + jnp.sum(b2.astype(f32)[:, None] * w4t, axis=0)
         + b3.astype(f32)).reshape(9, 1)                              # (9, 1)

    # ---- Single fused input prep: channel concat + conv `padding=1` pad ----
    x12 = jnp.concatenate([x1.astype(f32), x2.astype(f32)], axis=1)   # (N,6,H,W)
    x12 = jnp.pad(x12, ((0, 0), (0, 0), (1, 1), (1, 1)))              # (N,6,Hp,Wp)
    xf = x12.reshape(N, 6, Pn)                                        # free view

    # ---- Tiling: big lane tiles; >=2 grid steps for mid/large single-image ----
    if Pn <= tile and (N > 1 or Pn <= max_single_block):
        tile_p = Pn                                # one full-dim block per image
    else:
        min_tiles = 2 if N == 1 else 1             # let 2 TCs (v7x) / pipeline work
        n_tiles = max(min_tiles, -(-Pn // tile))
        tile_p = _round_up(-(-Pn // n_tiles), 128)
    n_tiles = -(-Pn // tile_p)

    out = pl.pallas_call(
        _fused_kernel,
        out_shape=jax.ShapeDtypeStruct((N, 9, Pn), f32),
        grid_spec=pltpu.PrefetchScalarGridSpec(
            num_scalar_prefetch=0,
            grid=(N, n_tiles),
            in_specs=[
                pl.BlockSpec((None, 6, tile_p), lambda n, j: (n, 0, j)),  # pixels
                pl.BlockSpec((9, 6), lambda n, j: (0, 0)),                # M^T
                pl.BlockSpec((9, 1), lambda n, j: (0, 0)),                # c
            ],
            out_specs=pl.BlockSpec((None, 9, tile_p), lambda n, j: (n, 0, j)),
        ),
        compiler_params=pltpu.CompilerParams(
            dimension_semantics=("parallel", "parallel")),
    )(xf, Mt, c)

    return out.reshape(N, 9, Hp, Wp)               # free view (NCHW contiguous)


def _reference(x1, x2, params):
    """Pure-JAX reference of the same (well-defined) semantics, high precision."""
    w1, b1, w2, b2, w3, b3, w4 = params
    hp = jax.lax.Precision.HIGHEST
    N, C, H, W = x1.shape
    Hp, Wp = H + 2, W + 2
    P = N * Hp * Wp

    def pix(x):
        xp = jnp.pad(x.astype(jnp.float32), ((0, 0), (0, 0), (1, 1), (1, 1)))
        return jnp.transpose(xp, (0, 2, 3, 1)).reshape(P, C)

    a, b = pix(x1), pix(x2)
    v1 = jnp.dot(a, w1.reshape(8, 3).T, precision=hp) + b1
    v2 = jnp.dot(b, w2.reshape(8, 3).T, precision=hp) + b2
    v3 = v1 + jnp.pad(a, ((0, 0), (0, 5)))      # zero-extend channels 3->8
    v4 = v2 + jnp.pad(b, ((0, 0), (0, 5)))
    v5 = jnp.dot(v3, w3.reshape(9, 8).T, precision=hp) + b3
    v6 = jnp.dot(v4, w4.reshape(9, 8).T, precision=hp)
    out = (v5 + v6).reshape(N, Hp, Wp, 9)
    return jnp.transpose(out, (0, 3, 1, 2))


def init_params(key):
    """Deterministic init mimicking PyTorch Conv2d default (uniform +/- 1/sqrt(fan_in))."""
    ks = jax.random.split(key, 7)

    def u(k, shape, fan_in):
        bound = 1.0 / math.sqrt(fan_in)
        return jax.random.uniform(k, shape, jnp.float32, -bound, bound)

    w1 = u(ks[0], (8, 3, 1, 1), 3)
    b1 = u(ks[1], (8,), 3)
    w2 = u(ks[2], (8, 3, 1, 1), 3)
    b2 = u(ks[3], (8,), 3)
    w3 = u(ks[4], (9, 8, 1, 1), 8)
    b3 = u(ks[5], (9,), 8)
    w4 = u(ks[6], (9, 8, 1, 1), 8)
    return (w1, b1, w2, b2, w3, b3, w4)


if __name__ == "__main__":
    key = jax.random.PRNGKey(0)
    kx, kp = jax.random.split(key, 2)
    params = init_params(kp)
    fwd = jax.jit(model_forward)

    # Cover the three code paths: single-block, batched (squeezed grid dim),
    # and multi-tile with a ragged (masked) last tile.
    for case_id, (N, H, W) in enumerate([(1, 16, 16), (2, 16, 16), (1, 100, 100)]):
        k1, k2 = jax.random.split(jax.random.fold_in(kx, case_id), 2)
        x1 = jax.random.normal(k1, (N, 3, H, W), jnp.float32)
        x2 = jax.random.normal(k2, (N, 3, H, W), jnp.float32)

        out = jax.block_until_ready(fwd(x1, x2, params))
        ref = _reference(x1, x2, params)
        assert out.shape == (N, 9, H + 2, W + 2), out.shape
        np.testing.assert_allclose(np.asarray(out), np.asarray(ref),
                                   rtol=1e-4, atol=1e-5)

    print("KERNEL_OK")
</pallas_src>

<mosaic_0001>
module attributes {stable_mosaic.version = 11 : i64} {
  func.func @_fused_kernel(%arg0: i32, %arg1: i32, %arg2: memref<1x6x324xf32, #tpu.memory_space<vmem>>, %arg3: memref<9x6xf32, #tpu.memory_space<vmem>>, %arg4: memref<9x1xf32, #tpu.memory_space<vmem>>, %arg5: memref<1x9x324xf32, #tpu.memory_space<vmem>>) attributes {dimension_semantics = [#tpu.dimension_semantics<parallel>, #tpu.dimension_semantics<parallel>], iteration_bounds = array<i64: 1, 1>, scalar_prefetch = 0 : i64, scratch_operands = 0 : i64, tpu.core_type = #tpu.core_type<tc>, window_params = [{transform_indices = @transform_0, window_bounds = array<i64: 1, 6, 324>}, {pipeline_mode = #tpu.pipeline_mode<synchronous>, transform_indices = @transform_1, window_bounds = array<i64: 9, 6>}, {pipeline_mode = #tpu.pipeline_mode<synchronous>, transform_indices = @transform_2, window_bounds = array<i64: 9, 1>}, {transform_indices = @transform_3, window_bounds = array<i64: 1, 9, 324>}]} {
    %c0 = arith.constant 0 : index
    %c0_0 = arith.constant 0 : index
    %c0_1 = arith.constant 0 : index
    %0 = vector.load %arg2[%c0, %c0_0, %c0_1] : memref<1x6x324xf32, #tpu.memory_space<vmem>>, vector<1x6x324xf32>
    %1 = vector.shape_cast %0 : vector<1x6x324xf32> to vector<6x324xf32>
    %c0_2 = arith.constant 0 : index
    %c0_3 = arith.constant 0 : index
    %2 = vector.load %arg3[%c0_2, %c0_3] : memref<9x6xf32, #tpu.memory_space<vmem>>, vector<9x6xf32>
    %c0_4 = arith.constant 0 : index
    %c0_5 = arith.constant 0 : index
    %3 = vector.load %arg4[%c0_4, %c0_5] : memref<9x1xf32, #tpu.memory_space<vmem>>, vector<9x1xf32>
    %4 = vector.extract_strided_slice %2 {offsets = [0, 0], sizes = [9, 1], strides = [1, 1]} : vector<9x6xf32> to vector<9x1xf32>
    %5 = vector.extract_strided_slice %1 {offsets = [0, 0], sizes = [1, 324], strides = [1, 1]} : vector<6x324xf32> to vector<1x324xf32>
    %6 = vector.broadcast %4 : vector<9x1xf32> to vector<9x324xf32>
    %7 = vector.broadcast %5 : vector<1x324xf32> to vector<9x324xf32>
    %8 = arith.mulf %6, %7 : vector<9x324xf32>
    %9 = vector.broadcast %3 : vector<9x1xf32> to vector<9x324xf32>
    %10 = arith.addf %9, %8 : vector<9x324xf32>
    %11 = vector.extract_strided_slice %2 {offsets = [0, 1], sizes = [9, 1], strides = [1, 1]} : vector<9x6xf32> to vector<9x1xf32>
    %12 = vector.extract_strided_slice %1 {offsets = [1, 0], sizes = [1, 324], strides = [1, 1]} : vector<6x324xf32> to vector<1x324xf32>
    %13 = vector.broadcast %11 : vector<9x1xf32> to vector<9x324xf32>
    %14 = vector.broadcast %12 : vector<1x324xf32> to vector<9x324xf32>
    %15 = arith.mulf %13, %14 : vector<9x324xf32>
    %16 = arith.addf %10, %15 : vector<9x324xf32>
    %17 = vector.extract_strided_slice %2 {offsets = [0, 2], sizes = [9, 1], strides = [1, 1]} : vector<9x6xf32> to vector<9x1xf32>
    %18 = vector.extract_strided_slice %1 {offsets = [2, 0], sizes = [1, 324], strides = [1, 1]} : vector<6x324xf32> to vector<1x324xf32>
    %19 = vector.broadcast %17 : vector<9x1xf32> to vector<9x324xf32>
    %20 = vector.broadcast %18 : vector<1x324xf32> to vector<9x324xf32>
    %21 = arith.mulf %19, %20 : vector<9x324xf32>
    %22 = arith.addf %16, %21 : vector<9x324xf32>
    %23 = vector.extract_strided_slice %2 {offsets = [0, 3], sizes = [9, 1], strides = [1, 1]} : vector<9x6xf32> to vector<9x1xf32>
    %24 = vector.extract_strided_slice %1 {offsets = [3, 0], sizes = [1, 324], strides = [1, 1]} : vector<6x324xf32> to vector<1x324xf32>
    %25 = vector.broadcast %23 : vector<9x1xf32> to vector<9x324xf32>
    %26 = vector.broadcast %24 : vector<1x324xf32> to vector<9x324xf32>
    %27 = arith.mulf %25, %26 : vector<9x324xf32>
    %28 = arith.addf %22, %27 : vector<9x324xf32>
    %29 = vector.extract_strided_slice %2 {offsets = [0, 4], sizes = [9, 1], strides = [1, 1]} : vector<9x6xf32> to vector<9x1xf32>
    %30 = vector.extract_strided_slice %1 {offsets = [4, 0], sizes = [1, 324], strides = [1, 1]} : vector<6x324xf32> to vector<1x324xf32>
    %31 = vector.broadcast %29 : vector<9x1xf32> to vector<9x324xf32>
    %32 = vector.broadcast %30 : vector<1x324xf32> to vector<9x324xf32>
    %33 = arith.mulf %31, %32 : vector<9x324xf32>
    %34 = arith.addf %28, %33 : vector<9x324xf32>
    %35 = vector.extract_strided_slice %2 {offsets = [0, 5], sizes = [9, 1], strides = [1, 1]} : vector<9x6xf32> to vector<9x1xf32>
    %36 = vector.extract_strided_slice %1 {offsets = [5, 0], sizes = [1, 324], strides = [1, 1]} : vector<6x324xf32> to vector<1x324xf32>
    %37 = vector.broadcast %35 : vector<9x1xf32> to vector<9x324xf32>
    %38 = vector.broadcast %36 : vector<1x324xf32> to vector<9x324xf32>
    %39 = arith.mulf %37, %38 : vector<9x324xf32>
    %40 = arith.addf %34, %39 : vector<9x324xf32>
    %c0_6 = arith.constant 0 : index
    %c0_7 = arith.constant 0 : index
    %c0_8 = arith.constant 0 : index
    %41 = vector.load %arg5[%c0_6, %c0_7, %c0_8] : memref<1x9x324xf32, #tpu.memory_space<vmem>>, vector<1x9x324xf32>
    %42 = vector.shape_cast %41 : vector<1x9x324xf32> to vector<9x324xf32>
    %43 = vector.shape_cast %40 : vector<9x324xf32> to vector<1x9x324xf32>
    tpu.vector_store %arg5[%c0_6, %c0_7, %c0_8], %43 {strides = array<i32>} : memref<1x9x324xf32, #tpu.memory_space<vmem>>, vector<1x9x324xf32>,
    return
  }
  func.func @transform_0(%arg0: i32, %arg1: i32) -> (i32, i32, i32) {
    %c0_i32 = arith.constant 0 : i32
    %c0_i32_0 = arith.constant 0 : i32
    return %arg0, %c0_i32, %arg1 : i32, i32, i32
  }
  func.func @transform_1(%arg0: i32, %arg1: i32) -> (i32, i32) {
    %c0_i32 = arith.constant 0 : i32
    %c0_i32_0 = arith.constant 0 : i32
    %c0_i32_1 = arith.constant 0 : i32
    return %c0_i32, %c0_i32_0 : i32, i32
  }
  func.func @transform_2(%arg0: i32, %arg1: i32) -> (i32, i32) {
    %c0_i32 = arith.constant 0 : i32
    %c0_i32_0 = arith.constant 0 : i32
    %c0_i32_1 = arith.constant 0 : i32
    return %c0_i32, %c0_i32_0 : i32, i32
  }
  func.func @transform_3(%arg0: i32, %arg1: i32) -> (i32, i32, i32) {
    %c0_i32 = arith.constant 0 : i32
    %c0_i32_0 = arith.constant 0 : i32
    return %arg0, %c0_i32, %arg1 : i32, i32, i32
  }
}

</mosaic_0001>

<llo_original>
// kernel: model_forward.1
$region0: #{model_forward.1}
  #allocation0 [shape = 'u32[]', space=smem, size = 0x4, offset = 0x4, fixed_abs, tag = 'smem constant byte address 0x4 - core index']
  #allocation1 [shape = 'u32[144,128]{1,0:T(1,128)}', space=vmem, size = 0x12000, scoped, tag = 'internal scratch']
  %s0 = inlined_call_operand.vmem [shape: f32[1,6,324], index: 0, kind: input, shape index: {}]
  %s1 = inlined_call_operand.vmem [shape: f32[9,6], index: 1, kind: input, shape index: {}]
  %s2 = inlined_call_operand.vmem [shape: f32[9,1], index: 2, kind: input, shape index: {}]
  %s3 = inlined_call_operand.vmem [shape: f32[1,9,324], index: 3, kind: output, shape index: {}]
  %s4 = sld [smem:[#allocation0]]
  $region22: #{model_forward.1} parent=0
    _
  %s6 = ssub.s32 1, %s4
  %s7 = scalar_select 0, %s6, %s4
  // Predicated region
  $region2: #{model_forward.1} parent=0 // pred_check
    _
  $region3: #{model_forward.1} parent=0 // pred_check_branch
    %9 = sbr.rel (0) target = $region5
  $region4: #{model_forward.1} parent=0 // pred_region
    _
  $region5: #{model_forward.1} parent=0 // pred_fallthru
    _
  // Predicated region
  $region6: #{model_forward.1} parent=0 // pred_check
    _
  $region7: #{model_forward.1} parent=0 // pred_check_branch
    %11 = sbr.rel (0) target = $region9
  $region8: #{model_forward.1} parent=0 // pred_region
    _
  $region9: #{model_forward.1} parent=0 // pred_fallthru
    _
  // Predicated region
  $region10: #{model_forward.1} parent=0 // pred_check
    _
  $region11: #{model_forward.1} parent=0 // pred_check_branch
    %13 = sbr.rel (0) target = $region13
  $region12: #{model_forward.1} parent=0 // pred_region
    _
  $region13: #{model_forward.1} parent=0 // pred_fallthru
    _
  %v14 = vld [vmem:[%s0] sm:$0x3f]
  %v15 = vld [vmem:[%s0 + $0x8] sm:$0x3f]
  %v16 = vld [vmem:[%s0 + $0x10] sm:$0x3f]
  %v17 = vld [vmem:[%s1] sm:$0xff]
  %v18 = vld [vmem:[%s1 + $0x8] sm:$0x1]
  %v19 = vld [vmem:[%s2] sm:$0xff]
  %v20 = vld [vmem:[%s2 + $0x8] sm:$0x1]
  %22 = vset.pattern.permute.xlu0 0
  %23 = vperm.xlu0 %22, %v17
  %v24 = vpop.permute.xlu0 %23
  %27 = vset.pattern.permute.xlu0 0
  %28 = vperm.xlu0 %27, %v18
  %v29 = vpop.permute.xlu0 %28
  %v31 = vlaneseq
  %v32 = vshrl.u32 %v31, 7
  %v33 = vsub.s32 0, %v32
  %v34 = vrot.slane %v14, %v33
  %v35 = vlaneseq
  %v36 = vshrl.u32 %v35, 7
  %v37 = vsub.s32 0, %v36
  %v38 = vrot.slane %v15, %v37
  %v39 = vlaneseq
  %v40 = vshrl.u32 %v39, 7
  %v41 = vsub.s32 0, %v40
  %v42 = vrot.slane %v16, %v41
  %v43 = vmul.f32 %v24, %v34
  %v44 = vmul.f32 %v24, %v38
  %v45 = vmul.f32 %v24, %v42
  %v46 = vmul.f32 %v29, %v34
  %v47 = vmul.f32 %v29, %v38
  %v48 = vmul.f32 %v29, %v42
  %50 = vset.pattern.permute.xlu0 0
  %51 = vperm.xlu0 %50, %v19
  %v52 = vpop.permute.xlu0 %51
  %55 = vset.pattern.permute.xlu0 0
  %56 = vperm.xlu0 %55, %v20
  %v57 = vpop.permute.xlu0 %56
  %v59 = vadd.f32 %v52, %v43
  %v60 = vadd.f32 %v52, %v44
  %v61 = vadd.f32 %v52, %v45
  %v62 = vadd.f32 %v57, %v46
  %v63 = vadd.f32 %v57, %v47
  %v64 = vadd.f32 %v57, %v48
  %65 = vset.pattern.permute.xlu0 1
  %66 = vperm.xlu0 %65, %v17
  %v67 = vpop.permute.xlu0 %66
  %69 = vset.pattern.permute.xlu0 1
  %70 = vperm.xlu0 %69, %v18
  %v71 = vpop.permute.xlu0 %70
  %v73 = vlaneseq
  %v74 = vshrl.u32 %v73, 7
  %v75 = vsub.s32 1, %v74
  %v76 = vrot.slane %v14, %v75
  %v77 = vlaneseq
  %v78 = vshrl.u32 %v77, 7
  %v79 = vsub.s32 1, %v78
  %v80 = vrot.slane %v15, %v79
  %v81 = vlaneseq
  %v82 = vshrl.u32 %v81, 7
  %v83 = vsub.s32 1, %v82
  %v84 = vrot.slane %v16, %v83
  %v85 = vmul.f32 %v67, %v76
  %v86 = vmul.f32 %v67, %v80
  %v87 = vmul.f32 %v67, %v84
  %v88 = vmul.f32 %v71, %v76
  %v89 = vmul.f32 %v71, %v80
  %v90 = vmul.f32 %v71, %v84
  %v91 = vadd.f32 %v59, %v85
  %v92 = vadd.f32 %v60, %v86
  %v93 = vadd.f32 %v61, %v87
  %v94 = vadd.f32 %v62, %v88
  %v95 = vadd.f32 %v63, %v89
  %v96 = vadd.f32 %v64, %v90
  %97 = vset.pattern.permute.xlu0 2
  %98 = vperm.xlu0 %97, %v17
  %v99 = vpop.permute.xlu0 %98
  %101 = vset.pattern.permute.xlu0 2
  %102 = vperm.xlu0 %101, %v18
  %v103 = vpop.permute.xlu0 %102
  %v105 = vlaneseq
  %v106 = vshrl.u32 %v105, 7
  %v107 = vsub.s32 2, %v106
  %v108 = vrot.slane %v14, %v107
  %v109 = vlaneseq
  %v110 = vshrl.u32 %v109, 7
  %v111 = vsub.s32 2, %v110
  %v112 = vrot.slane %v15, %v111
  %v113 = vlaneseq
  %v114 = vshrl.u32 %v113, 7
  %v115 = vsub.s32 2, %v114
  %v116 = vrot.slane %v16, %v115
  %v117 = vmul.f32 %v99, %v108
  %v118 = vmul.f32 %v99, %v112
  %v119 = vmul.f32 %v99, %v116
  %v120 = vmul.f32 %v103, %v108
  %v121 = vmul.f32 %v103, %v112
  %v122 = vmul.f32 %v103, %v116
  %v123 = vadd.f32 %v91, %v117
  %v124 = vadd.f32 %v92, %v118
  %v125 = vadd.f32 %v93, %v119
  %v126 = vadd.f32 %v94, %v120
  %v127 = vadd.f32 %v95, %v121
  %v128 = vadd.f32 %v96, %v122
  %129 = vset.pattern.permute.xlu0 3
  %130 = vperm.xlu0 %129, %v17
  %v131 = vpop.permute.xlu0 %130
  %133 = vset.pattern.permute.xlu0 3
  %134 = vperm.xlu0 %133, %v18
  %v135 = vpop.permute.xlu0 %134
  %v137 = vlaneseq
  %v138 = vshrl.u32 %v137, 7
  %v139 = vsub.s32 3, %v138
  %v140 = vrot.slane %v14, %v139
  %v141 = vlaneseq
  %v142 = vshrl.u32 %v141, 7
  %v143 = vsub.s32 3, %v142
  %v144 = vrot.slane %v15, %v143
  %v145 = vlaneseq
  %v146 = vshrl.u32 %v145, 7
  %v147 = vsub.s32 3, %v146
  %v148 = vrot.slane %v16, %v147
  %v149 = vmul.f32 %v131, %v140
  %v150 = vmul.f32 %v131, %v144
  %v151 = vmul.f32 %v131, %v148
  %v152 = vmul.f32 %v135, %v140
  %v153 = vmul.f32 %v135, %v144
  %v154 = vmul.f32 %v135, %v148
  %v155 = vadd.f32 %v123, %v149
  %v156 = vadd.f32 %v124, %v150
  %v157 = vadd.f32 %v125, %v151
  %v158 = vadd.f32 %v126, %v152
  %v159 = vadd.f32 %v127, %v153
  %v160 = vadd.f32 %v128, %v154
  %161 = vset.pattern.permute.xlu0 4
  %162 = vperm.xlu0 %161, %v17
  %v163 = vpop.permute.xlu0 %162
  %165 = vset.pattern.permute.xlu0 4
  %166 = vperm.xlu0 %165, %v18
  %v167 = vpop.permute.xlu0 %166
  %v169 = vlaneseq
  %v170 = vshrl.u32 %v169, 7
  %v171 = vsub.s32 4, %v170
  %v172 = vrot.slane %v14, %v171
  %v173 = vlaneseq
  %v174 = vshrl.u32 %v173, 7
  %v175 = vsub.s32 4, %v174
  %v176 = vrot.slane %v15, %v175
  %v177 = vlaneseq
  %v178 = vshrl.u32 %v177, 7
  %v179 = vsub.s32 4, %v178
  %v180 = vrot.slane %v16, %v179
  %v181 = vmul.f32 %v163, %v172
  %v182 = vmul.f32 %v163, %v176
  %v183 = vmul.f32 %v163, %v180
  %v184 = vmul.f32 %v167, %v172
  %v185 = vmul.f32 %v167, %v176
  %v186 = vmul.f32 %v167, %v180
  %v187 = vadd.f32 %v155, %v181
  %v188 = vadd.f32 %v156, %v182
  %v189 = vadd.f32 %v157, %v183
  %v190 = vadd.f32 %v158, %v184
  %v191 = vadd.f32 %v159, %v185
  %v192 = vadd.f32 %v160, %v186
  %193 = vset.pattern.permute.xlu0 5
  %194 = vperm.xlu0 %193, %v17
  %v195 = vpop.permute.xlu0 %194
  %197 = vset.pattern.permute.xlu0 5
  %198 = vperm.xlu0 %197, %v18
  %v199 = vpop.permute.xlu0 %198
  %v201 = vlaneseq
  %v202 = vshrl.u32 %v201, 7
  %v203 = vsub.s32 5, %v202
  %v204 = vrot.slane %v14, %v203
  %v205 = vlaneseq
  %v206 = vshrl.u32 %v205, 7
  %v207 = vsub.s32 5, %v206
  %v208 = vrot.slane %v15, %v207
  %v209 = vlaneseq
  %v210 = vshrl.u32 %v209, 7
  %v211 = vsub.s32 5, %v210
  %v212 = vrot.slane %v16, %v211
  %v213 = vmul.f32 %v195, %v204
  %v214 = vmul.f32 %v195, %v208
  %v215 = vmul.f32 %v195, %v212
  %v216 = vmul.f32 %v199, %v204
  %v217 = vmul.f32 %v199, %v208
  %v218 = vmul.f32 %v199, %v212
  %v219 = vadd.f32 %v187, %v213
  %v220 = vadd.f32 %v188, %v214
  %v221 = vadd.f32 %v189, %v215
  %v222 = vadd.f32 %v190, %v216
  %v223 = vadd.f32 %v191, %v217
  %v224 = vadd.f32 %v192, %v218
  %225 = vst [vmem:[%s3] sm:$0xff] %v219
  %226 = vst [vmem:[%s3 + $0x8] sm:$0xff] %v220
  %vm227 = vcmask 556032
  %228 = vst.msk [vmem:[%s3 + $0x10] sm:$0xff] %vm227, %v221
  %229 = vst [vmem:[%s3 + $0x18] sm:$0x1] %v222
  %230 = vst [vmem:[%s3 + $0x20] sm:$0x1] %v223
  %vm231 = vcmask 548864
  %232 = vst.msk [vmem:[%s3 + $0x28] sm:$0x1] %vm231, %v224
  // Predicated region
  $region14: #{model_forward.1} parent=0 // pred_check
    _
  $region15: #{model_forward.1} parent=0 // pred_check_branch
    %234 = sbr.rel (0) target = $region17
  $region16: #{model_forward.1} parent=0 // pred_region
    _
  $region17: #{model_forward.1} parent=0 // pred_fallthru
    _
  // Predicated region
  $region18: #{model_forward.1} parent=0 // pred_check
    _
  $region19: #{model_forward.1} parent=0 // pred_check_branch
    %236 = sbr.rel (0) target = $region21
  $region20: #{model_forward.1} parent=0 // pred_region
    _
  $region21: #{model_forward.1} parent=0 // pred_fallthru
    _

</llo_original>
